<compile_context>
chip_gen: v7x
topology: tpu7x:2x2x1
jax: 0.10.0
libtpu: 0.0.40
codegen_flags: <defaults>
</compile_context>

<pallas_src>
import jax
import jax.numpy as jnp
from jax.experimental import pallas as pl
from jax.experimental.pallas import tpu as pltpu


def _attention_pooling_kernel(x_ref, w_ref, b_ref, out_ref):
    # x_ref:   [Bt, C, L]  VMEM, native dtype
    # w_ref:   [C, 1]      VMEM, x dtype (stationary)
    # b_ref:   [1]         SMEM, f32
    # out_ref: [Bt, C]
    bias = b_ref[0]

    # ---- Conv1d(kernel_size=1) logits: VPU broadcast-multiply + sublane reduce over C ------
    xw = x_ref[...] * w_ref[...][None, :, :]                       # [Bt, C, L] native dtype
    logits = jnp.sum(xw.astype(jnp.float32), axis=1) + bias        # [Bt, L] f32

    # ---- Numerically-stable softmax over the sequence axis (lane reduce) -------------------
    m = jnp.max(logits, axis=-1, keepdims=True)                    # [Bt, 1]
    e = jnp.exp(logits - m)                                        # [Bt, L] f32 (EUP)
    denom = jnp.sum(e, axis=-1, keepdims=True)                     # [Bt, 1] f32

    # ---- Weighted sum over L: VPU multiply + lane reduce (re-read x_ref; short live range) --
    prod = x_ref[...] * e.astype(x_ref.dtype)[:, None, :]          # [Bt, C, L]
    pooled = jnp.sum(prod.astype(jnp.float32), axis=2)             # [Bt, C] f32

    # Normalize once on the small pooled result; exact reciprocal on the tiny [Bt, 1] denom.
    out_ref[...] = (pooled * pl.reciprocal(denom)).astype(out_ref.dtype)


def _sublane_multiple(itemsize):
    # Sub-32-bit dtypes pack along sublanes: f32 -> 8, bf16 -> 16, int8/fp8 -> 32.
    return {4: 8, 2: 16, 1: 32}.get(int(itemsize), 8)


def _vmem_capacity_bytes():
    try:
        cap = getattr(pltpu.get_tpu_info(), "vmem_capacity_bytes", None)
        if cap:
            return int(cap)
    except Exception:
        pass
    return 64 * 1024 * 1024  # conservative fallback (v7x per-TensorCore)


def _pick_batch_tile(batch, channels, seq_len, itemsize, budget_bytes, min_grid_steps=8):
    """Largest batch tile whose *real* VMEM footprint (padded x + padded output, both
    double-buffered, plus f32 softmax intermediates) fits the budget, while keeping enough
    grid steps for DMA/compute overlap and satisfying the (8,128) rule on the output block."""
    sub = _sublane_multiple(itemsize)
    c_sub = -(-channels // sub) * sub                 # sublane-padded channel rows of x
    l_lane = -(-seq_len // 128) * 128                 # lane-padded sequence length
    x_per_b = c_sub * l_lane * itemsize               # padded x bytes per batch row
    out_per_b = max(-(-channels // 128) * 128, 128) * itemsize
    f32_per_b = 2 * l_lane * 4                        # logits + exp intermediates (f32)
    per_b = 2 * x_per_b + 2 * out_per_b + f32_per_b   # x and out are double-buffered

    bt = max(1, budget_bytes // per_b)

    # Keep >= min_grid_steps grid steps when the batch allows (DMA overlap + megacore split).
    cap = (batch // min_grid_steps // 8) * 8
    if cap >= 8:
        bt = min(bt, cap)

    bt = min(bt, batch)
    if bt < batch:
        # Output block is (bt, C): second-to-last dim must be a multiple of 8 (or full batch).
        bt = max(8, (bt // 8) * 8)
        bt = min(bt, batch)
    return int(bt)


def attention_pooling(x, conv_weight, conv_bias, *, batch_tile=None):
    """x: [B, C, L]; conv_weight: [1, C, 1] (torch Conv1d(C, 1, k=1)); conv_bias: [1].
    Returns [B, C]."""
    B, C, L = x.shape
    w_col = conv_weight.reshape(C, 1).astype(x.dtype)   # stationary column, pre-cast (free)
    b1d = conv_bias.reshape(1).astype(jnp.float32)

    # Generation-aware VMEM sizing: ~3/4 of per-core VMEM (96 MiB v5e/v6e, 48 MiB v7x).
    vmem_limit = int(_vmem_capacity_bytes() * 3 // 4)
    vmem_limit = max(32 * 1024 * 1024, min(vmem_limit, 100 * 1024 * 1024))

    if batch_tile is None:
        batch_tile = _pick_batch_tile(
            B, C, L, x.dtype.itemsize, budget_bytes=int(vmem_limit * 0.85))
    bt = int(batch_tile)
    nb = pl.cdiv(B, bt)

    itemsize = x.dtype.itemsize
    flops = 4 * B * C * L + 6 * B * L                  # two multiply+reduce passes + softmax
    bytes_accessed = B * C * L * itemsize + B * C * itemsize + C * itemsize + 4

    out = pl.pallas_call(
        _attention_pooling_kernel,
        out_shape=jax.ShapeDtypeStruct((B, C), x.dtype),
        grid_spec=pltpu.PrefetchScalarGridSpec(
            num_scalar_prefetch=0,
            grid=(nb,),
            in_specs=[
                pl.BlockSpec((bt, C, L), lambda i: (i, 0, 0)),          # x, tiled over batch
                pl.BlockSpec((C, 1), lambda i: (0, 0)),                 # weight, stationary
                pl.BlockSpec(memory_space=pltpu.MemorySpace.SMEM),      # bias scalar
            ],
            out_specs=pl.BlockSpec((bt, C), lambda i: (i, 0)),
        ),
        compiler_params=pltpu.CompilerParams(
            dimension_semantics=("parallel",),          # megacore-shard the batch grid (v7x)
            vmem_limit_bytes=vmem_limit,
        ),
        cost_estimate=pl.CostEstimate(
            flops=flops, transcendentals=B * L, bytes_accessed=bytes_accessed),
    )(x, w_col, b1d)

    return out


def attention_pooling_reference(x, conv_weight, conv_bias):
    # Pure-JAX reference mirroring the PyTorch forward.
    w = conv_weight.reshape(-1)                               # [C]
    logits = jnp.einsum("bcl,c->bl", x, w) + conv_bias[0]     # [B, L]
    attn = jax.nn.softmax(logits, axis=-1)                    # [B, L]
    return jnp.sum(x * attn[:, None, :], axis=2)              # [B, C]


if __name__ == "__main__":
    key = jax.random.PRNGKey(0)
    k_x, k_w, k_b = jax.random.split(key, 3)

    B, C, L = 2, 4, 16                                        # [batch, channels, seq_len]
    x = jax.random.normal(k_x, (B, C, L), dtype=jnp.float32)

    # Deterministic parameter init for nn.Conv1d(C, 1, kernel_size=1):
    #   weight shape (1, C, 1), bias shape (1,)
    bound = 1.0 / (C ** 0.5)
    conv_weight = jax.random.uniform(k_w, (1, C, 1), jnp.float32, -bound, bound)
    conv_bias = jax.random.uniform(k_b, (1,), jnp.float32, -bound, bound)

    out = attention_pooling(x, conv_weight, conv_bias)
    out = jax.block_until_ready(out)

    ref = attention_pooling_reference(x, conv_weight, conv_bias)
    assert out.shape == (B, C), out.shape
    assert jnp.allclose(out, ref, atol=1e-4, rtol=1e-4), (out, ref)

    print("KERNEL_OK")
</pallas_src>

<mosaic_0001>
module attributes {stable_mosaic.version = 11 : i64} {
  func.func @_attention_pooling_kernel(%arg0: i32, %arg1: memref<2x4x16xf32, #tpu.memory_space<vmem>>, %arg2: memref<4x1xf32, #tpu.memory_space<vmem>>, %arg3: memref<1xf32, #tpu.memory_space<smem>>, %arg4: memref<2x4xf32, #tpu.memory_space<vmem>>) attributes {dimension_semantics = [#tpu.dimension_semantics<parallel>], iteration_bounds = array<i64: 1>, scalar_prefetch = 0 : i64, scratch_operands = 0 : i64, tpu.core_type = #tpu.core_type<tc>, window_params = [{transform_indices = @transform_0, window_bounds = array<i64: 2, 4, 16>}, {pipeline_mode = #tpu.pipeline_mode<synchronous>, transform_indices = @transform_1, window_bounds = array<i64: 4, 1>}, {transform_indices = @transform_2, window_bounds = array<i64: 1>}, {transform_indices = @transform_3, window_bounds = array<i64: 2, 4>}]} {
    %c0 = arith.constant 0 : index
    %0 = memref.load %arg3[%c0] : memref<1xf32, #tpu.memory_space<smem>>
    %c0_0 = arith.constant 0 : index
    %c0_1 = arith.constant 0 : index
    %c0_2 = arith.constant 0 : index
    %1 = vector.load %arg1[%c0_0, %c0_1, %c0_2] : memref<2x4x16xf32, #tpu.memory_space<vmem>>, vector<2x4x16xf32>
    %c0_3 = arith.constant 0 : index
    %c0_4 = arith.constant 0 : index
    %2 = vector.load %arg2[%c0_3, %c0_4] : memref<4x1xf32, #tpu.memory_space<vmem>>, vector<4x1xf32>
    %3 = vector.shape_cast %2 : vector<4x1xf32> to vector<1x4x1xf32>
    %4 = vector.broadcast %3 : vector<1x4x1xf32> to vector<2x4x16xf32>
    %5 = arith.mulf %1, %4 : vector<2x4x16xf32>
    %cst = arith.constant dense<0.000000e+00> : vector<2x16xf32>
    %6 = vector.multi_reduction <add>, %5, %cst [1] : vector<2x4x16xf32> to vector<2x16xf32>
    %7 = vector.broadcast %0 : f32 to vector<2x16xf32>
    %8 = arith.addf %6, %7 : vector<2x16xf32>
    %cst_5 = arith.constant dense<0xFF800000> : vector<2xf32>
    %9 = vector.multi_reduction <maximumf>, %8, %cst_5 [1] : vector<2x16xf32> to vector<2xf32>
    %10 = vector.shape_cast %9 : vector<2xf32> to vector<2x1xf32>
    %11 = vector.broadcast %10 : vector<2x1xf32> to vector<2x16xf32>
    %12 = arith.subf %8, %11 : vector<2x16xf32>
    %13 = math.exp %12 : vector<2x16xf32>
    %cst_6 = arith.constant dense<0.000000e+00> : vector<2xf32>
    %14 = vector.multi_reduction <add>, %13, %cst_6 [1] : vector<2x16xf32> to vector<2xf32>
    %15 = vector.shape_cast %14 : vector<2xf32> to vector<2x1xf32>
    %c0_7 = arith.constant 0 : index
    %c0_8 = arith.constant 0 : index
    %c0_9 = arith.constant 0 : index
    %16 = vector.load %arg1[%c0_7, %c0_8, %c0_9] : memref<2x4x16xf32, #tpu.memory_space<vmem>>, vector<2x4x16xf32>
    %17 = vector.shape_cast %13 : vector<2x16xf32> to vector<2x1x16xf32>
    %18 = vector.broadcast %17 : vector<2x1x16xf32> to vector<2x4x16xf32>
    %19 = arith.mulf %16, %18 : vector<2x4x16xf32>
    %cst_10 = arith.constant dense<0.000000e+00> : vector<2x4xf32>
    %20 = vector.multi_reduction <add>, %19, %cst_10 [2] : vector<2x4x16xf32> to vector<2x4xf32>
    %21 = tpu.reciprocal %15 : vector<2x1xf32> -> vector<2x1xf32>
    %22 = vector.broadcast %21 : vector<2x1xf32> to vector<2x4xf32>
    %23 = arith.mulf %20, %22 : vector<2x4xf32>
    %c0_11 = arith.constant 0 : index
    %c0_12 = arith.constant 0 : index
    %24 = vector.load %arg4[%c0_11, %c0_12] : memref<2x4xf32, #tpu.memory_space<vmem>>, vector<2x4xf32>
    tpu.vector_store %arg4[%c0_11, %c0_12], %23 {strides = array<i32>} : memref<2x4xf32, #tpu.memory_space<vmem>>, vector<2x4xf32>,
    return
  }
  func.func @transform_0(%arg0: i32) -> (i32, i32, i32) {
    %c0_i32 = arith.constant 0 : i32
    %c0_i32_0 = arith.constant 0 : i32
    %c0_i32_1 = arith.constant 0 : i32
    return %arg0, %c0_i32, %c0_i32_0 : i32, i32, i32
  }
  func.func @transform_1(%arg0: i32) -> (i32, i32) {
    %c0_i32 = arith.constant 0 : i32
    %c0_i32_0 = arith.constant 0 : i32
    %c0_i32_1 = arith.constant 0 : i32
    return %c0_i32, %c0_i32_0 : i32, i32
  }
  func.func @transform_2(%arg0: i32) -> i32 {
    %c0_i32 = arith.constant 0 : i32
    %c0_i32_0 = arith.constant 0 : i32
    return %c0_i32 : i32
  }
  func.func @transform_3(%arg0: i32) -> (i32, i32) {
    %c0_i32 = arith.constant 0 : i32
    %c0_i32_0 = arith.constant 0 : i32
    return %arg0, %c0_i32 : i32, i32
  }
}

</mosaic_0001>

<llo_original>
// kernel: tpu_custom_call.1
$region0: #{tpu_custom_call.1}
  #allocation0 [shape = 'u32[]', space=smem, size = 0x4, offset = 0x4, fixed_abs, tag = 'smem constant byte address 0x4 - core index']
  #allocation1 [shape = 'u32[144,128]{1,0:T(1,128)}', space=vmem, size = 0x12000, scoped, tag = 'internal scratch']
  #allocation2 [shape = 'f32[1]{0:T(128)S(6)}', space=smem, size = 0x200, scoped, tag = 'scoped memory for tpu_custom_call.1']
  %s0 = inlined_call_operand.vmem [shape: f32[2,4,16], index: 0, kind: input, shape index: {}]
  %s1 = inlined_call_operand.vmem [shape: f32[4,1], index: 1, kind: input, shape index: {}]
  %s2 = inlined_call_operand.<no memory space> [shape: f32[1], index: 2, kind: input, shape index: {}]
  %s3 = inlined_call_operand.hbm [shape: f32[2,4], index: 3, kind: output, shape index: {}]
  %s4 = sld [smem:[#allocation0]]
  $region22: #{tpu_custom_call.1} parent=0
    _
  %s6 = ssub.s32 1, %s4
  %s7 = scalar_select 0, %s6, %s4
  %8 = sst [smem:[#allocation2]] %s2
  $region1: #{tpu_custom_call.1} parent=0
    #allocation3 [shape = 'u8[1024]{0}', space=vmem, size = 0x400, scoped, tag = 'output window, operand 0, single buffered']
    #allocation4 [shape = 's32[1]{0}', space=sflag, size = 0x4, scoped, tag = 'scoped memory for tpu_custom_call.1']
    %9 = vsyncpa [#allocation4], 0
    // Predicated region
    $region2: #{tpu_custom_call.1} parent=1 // pred_check
      _
    $region3: #{tpu_custom_call.1} parent=1 // pred_check_branch
      %11 = sbr.rel (0) target = $region5
    $region4: #{tpu_custom_call.1} parent=1 // pred_region
      _
    $region5: #{tpu_custom_call.1} parent=1 // pred_fallthru
      _
    // Predicated region
    $region6: #{tpu_custom_call.1} parent=1 // pred_check
      _
    $region7: #{tpu_custom_call.1} parent=1 // pred_check_branch
      %13 = sbr.rel (0) target = $region9
    $region8: #{tpu_custom_call.1} parent=1 // pred_region
      _
    $region9: #{tpu_custom_call.1} parent=1 // pred_fallthru
      _
    // Predicated region
    $region10: #{tpu_custom_call.1} parent=1 // pred_check
      _
    $region11: #{tpu_custom_call.1} parent=1 // pred_check_branch
      %15 = sbr.rel (0) target = $region13
    $region12: #{tpu_custom_call.1} parent=1 // pred_region
      _
    $region13: #{tpu_custom_call.1} parent=1 // pred_fallthru
      _
    %s16 = sld [smem:[#allocation2]]
    %v17 = vld [vmem:[%s0] sm:$0xf]
    %v18 = vld [vmem:[%s0 + $0x4] sm:$0xf]
    %v19 = vld [vmem:[%s1] sm:$0xf]
    %21 = vset.pattern.permute.xlu0 0
    %22 = vperm.xlu0 %21, %v19
    %v23 = vpop.permute.xlu0 %22
    %v25 = vmul.f32 %v17, %v23
    %v26 = vmul.f32 %v18, %v23
    %vm27 = vcmask 125952
    %v28 = vsel %vm27, %v25, 0.0
    %v29 = vrot.slane %v28, 4
    %v30 = vadd.f32 %v28, %v29
    %v31 = vrot.slane %v30, 2
    %v32 = vadd.f32 %v30, %v31
    %v33 = vrot.slane %v32, 1
    %v34 = vadd.f32 %v32, %v33
    %v35 = vsel %vm27, %v26, 0.0
    %v36 = vrot.slane %v35, 4
    %v37 = vadd.f32 %v35, %v36
    %v38 = vrot.slane %v37, 2
    %v39 = vadd.f32 %v37, %v38
    %v40 = vrot.slane %v39, 1
    %v41 = vadd.f32 %v39, %v40
    %v42 = vstv %s16
    %v43 = vadd.f32 %v34, %v42
    %v44 = vadd.f32 %v41, %v42
    %vm47 = vcmask 1041409
    %v48 = vsel %vm47, %v44, %v43
    %vm50 = vcmask 123904
    %v51 = vsel %vm50, %v48, -inf
    %52 = vmax.xlane.f32.xlu0 %v51
    %v53 = vpop.xlane.xlu0 %52
    %v55 = vrot.slane %v53, 1
    %v58 = vsub.f32 %v43, %v53
    %v59 = vsub.f32 %v44, %v55
    %v60 = vmul.f32 %v58, 1.442695
    %v61 = vpow.pop %v60
    %v62 = vmul.f32 %v59, 1.442695
    %v63 = vpow.pop %v62
    %v66 = vrot.slane %v63, 7
    %v67 = vsel %vm47, %v66, %v61
    %v69 = vsel %vm50, %v67, 0.0
    %70 = vadd.xlane.f32.xlu0 %v69
    %v71 = vpop.xlane.xlu0 %70
    %v72 = vlaneseq
    %v73 = vshrl.u32 %v72, 7
    %v74 = vsub.s32 0, %v73
    %v75 = vrot.slane %v61, %v74
    %v76 = vlaneseq
    %v77 = vshrl.u32 %v76, 7
    %v78 = vsub.s32 0, %v77
    %v79 = vrot.slane %v63, %v78
    %v80 = vmul.f32 %v17, %v75
    %v81 = vmul.f32 %v18, %v79
    %v82 = vsel %vm27, %v80, 0.0
    %83 = vadd.xlane.f32.xlu0 %v82
    %v84 = vpop.xlane.xlu0 %83
    %v85 = vsel %vm27, %v81, 0.0
    %86 = vadd.xlane.f32.xlu0 %v85
    %v87 = vpop.xlane.xlu0 %86
    %v88 = vrcp.pop %v71
    %v90 = vlaneseq
    %v91 = vshrl.u32 %v90, 7
    %v92 = vsub.s32 0, %v91
    %v93 = vrot.slane %v88, %v92
    %v94 = vlaneseq
    %v95 = vshrl.u32 %v94, 7
    %v96 = vsub.s32 1, %v95
    %v97 = vrot.slane %v88, %v96
    %v100 = vmul.f32 %v84, %v93
    %v101 = vmul.f32 %v87, %v97
    %104 = vset.pattern.permute.xlu0 0
    %105 = vperm.xlu0 %104, %v100
    %v106 = vpop.permute.xlu0 %105
    %107 = vset.pattern.permute.xlu0 0
    %108 = vperm.xlu0 %107, %v101
    %v109 = vpop.permute.xlu0 %108
    %v110 = vlaneseq
    %v111 = vand.u32 %v110, 127
    %v112 = vlaneseq
    %v113 = vshrl.u32 %v112, 7
    %v114 = vsub.s32 %v111, %v113
    %v115 = vrot.slane %v106, %v114
    %v116 = vlaneseq
    %v117 = vshrl.u32 %v116, 7
    %v118 = vsub.s32 %v111, %v117
    %v119 = vrot.slane %v109, %v118
    %v120 = vsel %vm47, %v119, %v115
    %vm122 = vcmask 25600
    %123 = vst.msk [vmem:[#allocation3] sm:$0x3] %vm122, %v120
    // Predicated region
    $region14: #{tpu_custom_call.1} parent=1 // pred_check
      _
    $region15: #{tpu_custom_call.1} parent=1 // pred_check_branch
      %125 = sbr.rel (0) target = $region17
    $region16: #{tpu_custom_call.1} parent=1 // pred_region
      %s127 = ssub.s32 32, 32
      %128 = vsyncadd [#allocation4], %s127
      %s130 = sshll.u32 [#allocation3], 4
      %s131 = int_to_ptr.vmem [resolvable:$true] %s130
      %133 = dma.vmem_to_hbm [thread:$0]  %s131, 32, %s3, [#allocation4]
    $region17: #{tpu_custom_call.1} parent=1 // pred_fallthru
      _
    // Predicated region
    $region18: #{tpu_custom_call.1} parent=1 // pred_check
      _
    $region19: #{tpu_custom_call.1} parent=1 // pred_check_branch
      %135 = sbr.rel (0) target = $region21
    $region20: #{tpu_custom_call.1} parent=1 // pred_region
      %136 = dma.done [#allocation4], 32
    $region21: #{tpu_custom_call.1} parent=1 // pred_fallthru
      _
    %137 = vsyncpa [#allocation4], 1

</llo_original>
